<compile_context>
chip_gen: v6e
topology: v6e:2x2x1
jax: 0.10.0
libtpu: 0.0.40
codegen_flags: <defaults>
</compile_context>

<pallas_src>
import jax
import jax.numpy as jnp
from jax.experimental import pallas as pl
from jax.experimental.pallas import tpu as pltpu


def _round_up(x, m):
    return (x + m - 1) // m * m


def _vmem_limit_bytes():
    # v5e/v6e: 128 MiB physical VMEM -> allow large tiles; v7x: 64 MiB/TC -> stay <= 48 MiB.
    try:
        kind = jax.devices()[0].device_kind.lower()
    except Exception:
        return 48 * 1024 * 1024
    if "v5" in kind or "v6" in kind:
        return 96 * 1024 * 1024
    return 48 * 1024 * 1024


# ---------------- Pass 1: channel-major conv GEMM + per-tile BN partial sums ----------------
def _conv_stats_kernel(p_ref, w_ref, y_ref, stats_ref):
    # bf16 GEMM on the MXU, f32 accumulation.  [Cout,K] @ [K,Mt] -> [Cout,Mt]
    acc = jnp.dot(w_ref[...], p_ref[0], preferred_element_type=jnp.float32)
    y_ref[...] = acc.astype(y_ref.dtype)[None]                # bf16 intermediate, lane-dense
    # One-pass BN partial statistics (sum, sum-of-squares) for this tile; f32.
    s1 = jnp.sum(acc, axis=1, keepdims=True)                  # [Cout, 1]
    s2 = jnp.sum(acc * acc, axis=1, keepdims=True)            # [Cout, 1]
    stats_ref[...] = jnp.concatenate([s1, s2], axis=1)[None, None]   # [1,1,Cout,2]


# ---------------- Pass 2: per-channel affine (folded BN) + ReLU, NCHW output ----------------
def _bn_relu_kernel(y_ref, scale_ref, shift_ref, o_ref):
    y = y_ref[0].astype(jnp.float32) * scale_ref[...] + shift_ref[...]   # [Cout, Mt]
    o_ref[...] = jnp.maximum(y, 0.0)[None].astype(o_ref.dtype)


def _im2col_channel_major(x_nchw, k, stride, padding, hwp, compute_dtype):
    """Builds bf16 patches in channel-major layout [N, K, HWp], K = (kh,kw,cin)."""
    N, C, H, W = x_nchw.shape
    xb = x_nchw.astype(compute_dtype)                          # cast before expansion
    xp = jnp.pad(xb, ((0, 0), (0, 0), (padding, padding), (padding, padding)))
    Ho = (H + 2 * padding - k) // stride + 1
    Wo = (W + 2 * padding - k) // stride + 1
    taps = [xp[:, :, i:i + stride * Ho:stride, j:j + stride * Wo:stride]   # [N,C,Ho,Wo]
            for i in range(k) for j in range(k)]
    p = jnp.stack(taps, axis=1).reshape(N, k * k * C, Ho * Wo)  # [N, K, HW]
    hw = Ho * Wo
    if hwp != hw:
        p = jnp.pad(p, ((0, 0), (0, 0), (0, hwp - hw)))
    return p, Ho, Wo


def cbr_forward(x, conv_weight, bn_gamma, bn_beta, *, stride=1, padding=0,
                eps=1e-5, m_tile=1024, compute_dtype=jnp.bfloat16):
    """x: [N, C_in, H, W] (NCHW). conv_weight: [C_out, C_in, k, k]. Returns NCHW f32."""
    N, Cin, H, W = x.shape
    Cout, _, k, _ = conv_weight.shape
    K = k * k * Cin
    Ho = (H + 2 * padding - k) // stride + 1
    Wo = (W + 2 * padding - k) // stride + 1
    HW = Ho * Wo

    # --- Spatial tile (rows of HW per grid step). Keep multi-tile tiles a multiple of 128
    #     so pass-2 output stores stay lane-dense; single-tile blocks use the full-dim rule.
    m_tile = max(128, _round_up(m_tile, 128))
    if HW <= m_tile:
        Mt = _round_up(HW, 16)
        if N == 1 and Mt > 128:            # guarantee >= 2 total grid steps (megacore/pipelining)
            Mt = _round_up(pl.cdiv(HW, 2), 128)
    else:
        Mt = m_tile
    HWp = _round_up(HW, Mt)
    T = HWp // Mt
    vmem_limit = _vmem_limit_bytes()

    # --- Host-side layout glue: bf16 channel-major patches + [Cout, K] weight.
    patches, Ho, Wo = _im2col_channel_major(x, k, stride, padding, HWp, compute_dtype)
    w_mat = jnp.transpose(conv_weight, (0, 2, 3, 1)).reshape(Cout, K).astype(compute_dtype)

    # --- Pass 1: tiled channel-major GEMM + per-tile BN partial sums (pipelined, megacore) ---
    conv_out, stats = pl.pallas_call(
        _conv_stats_kernel,
        out_shape=(jax.ShapeDtypeStruct((N, Cout, HWp), compute_dtype),
                   jax.ShapeDtypeStruct((N, T, Cout, 2), jnp.float32)),
        grid_spec=pltpu.PrefetchScalarGridSpec(
            num_scalar_prefetch=0,
            grid=(N, T),
            in_specs=[
                pl.BlockSpec((1, K, Mt), lambda n, t: (n, 0, t)),
                pl.BlockSpec((Cout, K), lambda n, t: (0, 0)),
            ],
            out_specs=[
                pl.BlockSpec((1, Cout, Mt), lambda n, t: (n, 0, t)),
                pl.BlockSpec((1, 1, Cout, 2), lambda n, t: (n, t, 0, 0)),
            ],
        ),
        compiler_params=pltpu.CompilerParams(
            dimension_semantics=("parallel", "parallel"),
            vmem_limit_bytes=vmem_limit,
        ),
    )(patches, w_mat)

    # --- Per-channel fold (O(Cout) glue): batch mean / biased var -> scale/shift ---
    # Padded HW rows are all-zero patches -> contribute 0 to both sums.
    M = N * HW
    s1 = jnp.sum(stats[..., 0], axis=(0, 1))          # [Cout]
    s2 = jnp.sum(stats[..., 1], axis=(0, 1))          # [Cout]
    mean = s1 / M
    # E[x^2] - mean^2 in f32: fine at these scales; use shifted sums if tighter accuracy needed.
    var = s2 / M - mean * mean
    inv = jax.lax.rsqrt(var + eps)
    gamma = bn_gamma.astype(jnp.float32)
    beta = bn_beta.astype(jnp.float32)
    scale = (gamma * inv).reshape(Cout, 1)
    shift = (beta - mean * gamma * inv).reshape(Cout, 1)

    # --- Pass 2: elementwise normalize + ReLU, emitting NCHW(-flat) directly ---
    out3d = pl.pallas_call(
        _bn_relu_kernel,
        out_shape=jax.ShapeDtypeStruct((N, Cout, HWp), jnp.float32),
        grid_spec=pltpu.PrefetchScalarGridSpec(
            num_scalar_prefetch=0,
            grid=(N, T),
            in_specs=[
                pl.BlockSpec((1, Cout, Mt), lambda n, t: (n, 0, t)),
                pl.BlockSpec((Cout, 1), lambda n, t: (0, 0)),
                pl.BlockSpec((Cout, 1), lambda n, t: (0, 0)),
            ],
            out_specs=pl.BlockSpec((1, Cout, Mt), lambda n, t: (n, 0, t)),
        ),
        compiler_params=pltpu.CompilerParams(
            dimension_semantics=("parallel", "parallel"),
            vmem_limit_bytes=vmem_limit,
        ),
    )(conv_out, scale, shift)

    if HWp != HW:
        out3d = out3d[:, :, :HW]
    return out3d.reshape(N, Cout, Ho, Wo)   # pure metadata reshape (already channel-major)


if __name__ == "__main__":
    # CBR(inplanes=4, planes=8, kernel=3, stride=1, padding=1)
    inplanes, planes, kernel, stride, padding = 4, 8, 3, 1, 1
    N, H, W = 2, 16, 16

    key = jax.random.PRNGKey(0)
    kx, kw = jax.random.split(key)
    x = jax.random.normal(kx, (N, inplanes, H, W), dtype=jnp.float32)

    # Deterministic Conv2d weight (Kaiming-uniform-like scale), BN gamma=1, beta=0.
    fan_in = inplanes * kernel * kernel
    bound = 1.0 / (fan_in ** 0.5)
    conv_weight = jax.random.uniform(
        kw, (planes, inplanes, kernel, kernel),
        minval=-bound, maxval=bound, dtype=jnp.float32)
    bn_gamma = jnp.ones((planes,), dtype=jnp.float32)
    bn_beta = jnp.zeros((planes,), dtype=jnp.float32)

    fwd = jax.jit(lambda a, w, g, b: cbr_forward(
        a, w, g, b, stride=stride, padding=padding))
    out = fwd(x, conv_weight, bn_gamma, bn_beta)
    jax.block_until_ready(out)

    # Sanity: shape, dtype, ReLU non-negativity, and numeric check against plain JAX.
    # Reference uses the same bf16-quantized GEMM inputs, f32 everywhere else; the kernel
    # additionally stores the conv intermediate in bf16, so worst-case per-element error
    # is ~|out| * 2^-8 (a few 1e-2 at the distribution tail); mean error stays ~1e-3.
    assert out.shape == (N, planes, H, W), out.shape
    assert out.dtype == jnp.float32, out.dtype
    assert bool(jnp.all(out >= 0.0))
    xq = x.astype(jnp.bfloat16).astype(jnp.float32)
    wq = conv_weight.astype(jnp.bfloat16).astype(jnp.float32)
    ref_conv = jax.lax.conv_general_dilated(
        xq, wq, (stride, stride), [(padding, padding), (padding, padding)],
        dimension_numbers=("NCHW", "OIHW", "NCHW"))
    mu = ref_conv.mean(axis=(0, 2, 3), keepdims=True)
    va = ref_conv.var(axis=(0, 2, 3), keepdims=True)
    ref = jnp.maximum((ref_conv - mu) * jax.lax.rsqrt(va + 1e-5), 0.0)
    err = jnp.abs(out - ref)
    max_err = float(jnp.max(err))
    mean_err = float(jnp.mean(err))
    assert max_err < 3e-2, max_err
    assert mean_err < 3e-3, mean_err

    print("KERNEL_OK")
</pallas_src>

<mosaic_0001>
module attributes {stable_mosaic.version = 11 : i64} {
  func.func @_conv_stats_kernel(%arg0: i32, %arg1: i32, %arg2: memref<1x36x256xbf16, #tpu.memory_space<vmem>>, %arg3: memref<8x36xbf16, #tpu.memory_space<vmem>>, %arg4: memref<1x8x256xbf16, #tpu.memory_space<vmem>>, %arg5: memref<1x1x8x2xf32, #tpu.memory_space<vmem>>) attributes {dimension_semantics = [#tpu.dimension_semantics<parallel>, #tpu.dimension_semantics<parallel>], iteration_bounds = array<i64: 2, 1>, scalar_prefetch = 0 : i64, scratch_operands = 0 : i64, tpu.core_type = #tpu.core_type<tc>, window_params = [{transform_indices = @transform_0, window_bounds = array<i64: 1, 36, 256>}, {pipeline_mode = #tpu.pipeline_mode<synchronous>, transform_indices = @transform_1, window_bounds = array<i64: 8, 36>}, {transform_indices = @transform_2, window_bounds = array<i64: 1, 8, 256>}, {transform_indices = @transform_3, window_bounds = array<i64: 1, 1, 8, 2>}]} {
    %c0 = arith.constant 0 : index
    %c0_0 = arith.constant 0 : index
    %0 = vector.load %arg3[%c0, %c0_0] : memref<8x36xbf16, #tpu.memory_space<vmem>>, vector<8x36xbf16>
    %c0_1 = arith.constant 0 : index
    %c0_2 = arith.constant 0 : index
    %c0_3 = arith.constant 0 : index
    %1 = vector.load %arg2[%c0_1, %c0_2, %c0_3] : memref<1x36x256xbf16, #tpu.memory_space<vmem>>, vector<1x36x256xbf16>
    %2 = vector.shape_cast %1 : vector<1x36x256xbf16> to vector<36x256xbf16>
    %cst = arith.constant dense<0.000000e+00> : vector<8x256xf32>
    %3 = tpu.matmul %0, %2, %cst {dimension_numbers = #tpu.dot_dimension_numbers<[1], [0], [0], [1], [0, 0, 1, 1], [], []>} : vector<8x36xbf16>, vector<36x256xbf16>, vector<8x256xf32> -> vector<8x256xf32>
    %4 = arith.truncf %3 : vector<8x256xf32> to vector<8x256xbf16>
    %5 = vector.shape_cast %4 : vector<8x256xbf16> to vector<1x8x256xbf16>
    %c0_4 = arith.constant 0 : index
    %c0_5 = arith.constant 0 : index
    %c0_6 = arith.constant 0 : index
    %6 = vector.load %arg4[%c0_4, %c0_5, %c0_6] : memref<1x8x256xbf16, #tpu.memory_space<vmem>>, vector<1x8x256xbf16>
    tpu.vector_store %arg4[%c0_4, %c0_5, %c0_6], %5 {strides = array<i32>} : memref<1x8x256xbf16, #tpu.memory_space<vmem>>, vector<1x8x256xbf16>,
    %cst_7 = arith.constant dense<0.000000e+00> : vector<8xf32>
    %7 = vector.multi_reduction <add>, %3, %cst_7 [1] : vector<8x256xf32> to vector<8xf32>
    %8 = vector.shape_cast %7 : vector<8xf32> to vector<8x1xf32>
    %9 = arith.mulf %3, %3 : vector<8x256xf32>
    %cst_8 = arith.constant dense<0.000000e+00> : vector<8xf32>
    %10 = vector.multi_reduction <add>, %9, %cst_8 [1] : vector<8x256xf32> to vector<8xf32>
    %11 = vector.shape_cast %10 : vector<8xf32> to vector<8x1xf32>
    %12 = tpu.concatenate %8, %11 in 1 : vector<8x1xf32>, vector<8x1xf32> -> vector<8x2xf32>
    %13 = vector.shape_cast %12 : vector<8x2xf32> to vector<1x1x8x2xf32>
    %c0_9 = arith.constant 0 : index
    %c0_10 = arith.constant 0 : index
    %c0_11 = arith.constant 0 : index
    %c0_12 = arith.constant 0 : index
    %14 = vector.load %arg5[%c0_9, %c0_10, %c0_11, %c0_12] : memref<1x1x8x2xf32, #tpu.memory_space<vmem>>, vector<1x1x8x2xf32>
    tpu.vector_store %arg5[%c0_9, %c0_10, %c0_11, %c0_12], %13 {strides = array<i32>} : memref<1x1x8x2xf32, #tpu.memory_space<vmem>>, vector<1x1x8x2xf32>,
    return
  }
  func.func @transform_0(%arg0: i32, %arg1: i32) -> (i32, i32, i32) {
    %c0_i32 = arith.constant 0 : i32
    %c0_i32_0 = arith.constant 0 : i32
    return %arg0, %c0_i32, %arg1 : i32, i32, i32
  }
  func.func @transform_1(%arg0: i32, %arg1: i32) -> (i32, i32) {
    %c0_i32 = arith.constant 0 : i32
    %c0_i32_0 = arith.constant 0 : i32
    %c0_i32_1 = arith.constant 0 : i32
    return %c0_i32, %c0_i32_0 : i32, i32
  }
  func.func @transform_2(%arg0: i32, %arg1: i32) -> (i32, i32, i32) {
    %c0_i32 = arith.constant 0 : i32
    %c0_i32_0 = arith.constant 0 : i32
    return %arg0, %c0_i32, %arg1 : i32, i32, i32
  }
  func.func @transform_3(%arg0: i32, %arg1: i32) -> (i32, i32, i32, i32) {
    %c0_i32 = arith.constant 0 : i32
    %c0_i32_0 = arith.constant 0 : i32
    %c0_i32_1 = arith.constant 0 : i32
    return %arg0, %arg1, %c0_i32, %c0_i32_0 : i32, i32, i32, i32
  }
}

module attributes {stable_mosaic.version = 11 : i64} {
  func.func @_bn_relu_kernel(%arg0: i32, %arg1: i32, %arg2: memref<1x8x256xbf16, #tpu.memory_space<vmem>>, %arg3: memref<8x1xf32, #tpu.memory_space<vmem>>, %arg4: memref<8x1xf32, #tpu.memory_space<vmem>>, %arg5: memref<1x8x256xf32, #tpu.memory_space<vmem>>) attributes {dimension_semantics = [#tpu.dimension_semantics<parallel>, #tpu.dimension_semantics<parallel>], iteration_bounds = array<i64: 2, 1>, scalar_prefetch = 0 : i64, scratch_operands = 0 : i64, tpu.core_type = #tpu.core_type<tc>, window_params = [{transform_indices = @transform_0, window_bounds = array<i64: 1, 8, 256>}, {pipeline_mode = #tpu.pipeline_mode<synchronous>, transform_indices = @transform_1, window_bounds = array<i64: 8, 1>}, {pipeline_mode = #tpu.pipeline_mode<synchronous>, transform_indices = @transform_2, window_bounds = array<i64: 8, 1>}, {transform_indices = @transform_3, window_bounds = array<i64: 1, 8, 256>}]} {
    %c0 = arith.constant 0 : index
    %c0_0 = arith.constant 0 : index
    %c0_1 = arith.constant 0 : index
    %0 = vector.load %arg2[%c0, %c0_0, %c0_1] : memref<1x8x256xbf16, #tpu.memory_space<vmem>>, vector<1x8x256xbf16>
    %1 = vector.shape_cast %0 : vector<1x8x256xbf16> to vector<8x256xbf16>
    %2 = arith.extf %1 : vector<8x256xbf16> to vector<8x256xf32>
    %c0_2 = arith.constant 0 : index
    %c0_3 = arith.constant 0 : index
    %3 = vector.load %arg3[%c0_2, %c0_3] : memref<8x1xf32, #tpu.memory_space<vmem>>, vector<8x1xf32>
    %4 = vector.broadcast %3 : vector<8x1xf32> to vector<8x256xf32>
    %5 = arith.mulf %2, %4 : vector<8x256xf32>
    %c0_4 = arith.constant 0 : index
    %c0_5 = arith.constant 0 : index
    %6 = vector.load %arg4[%c0_4, %c0_5] : memref<8x1xf32, #tpu.memory_space<vmem>>, vector<8x1xf32>
    %7 = vector.broadcast %6 : vector<8x1xf32> to vector<8x256xf32>
    %8 = arith.addf %5, %7 : vector<8x256xf32>
    %cst = arith.constant 0.000000e+00 : f32
    %9 = vector.broadcast %cst : f32 to vector<8x256xf32>
    %10 = arith.maximumf %8, %9 : vector<8x256xf32>
    %11 = vector.shape_cast %10 : vector<8x256xf32> to vector<1x8x256xf32>
    %c0_6 = arith.constant 0 : index
    %c0_7 = arith.constant 0 : index
    %c0_8 = arith.constant 0 : index
    %12 = vector.load %arg5[%c0_6, %c0_7, %c0_8] : memref<1x8x256xf32, #tpu.memory_space<vmem>>, vector<1x8x256xf32>
    tpu.vector_store %arg5[%c0_6, %c0_7, %c0_8], %11 {strides = array<i32>} : memref<1x8x256xf32, #tpu.memory_space<vmem>>, vector<1x8x256xf32>,
    return
  }
  func.func @transform_0(%arg0: i32, %arg1: i32) -> (i32, i32, i32) {
    %c0_i32 = arith.constant 0 : i32
    %c0_i32_0 = arith.constant 0 : i32
    return %arg0, %c0_i32, %arg1 : i32, i32, i32
  }
  func.func @transform_1(%arg0: i32, %arg1: i32) -> (i32, i32) {
    %c0_i32 = arith.constant 0 : i32
    %c0_i32_0 = arith.constant 0 : i32
    %c0_i32_1 = arith.constant 0 : i32
    return %c0_i32, %c0_i32_0 : i32, i32
  }
  func.func @transform_2(%arg0: i32, %arg1: i32) -> (i32, i32) {
    %c0_i32 = arith.constant 0 : i32
    %c0_i32_0 = arith.constant 0 : i32
    %c0_i32_1 = arith.constant 0 : i32
    return %c0_i32, %c0_i32_0 : i32, i32
  }
  func.func @transform_3(%arg0: i32, %arg1: i32) -> (i32, i32, i32) {
    %c0_i32 = arith.constant 0 : i32
    %c0_i32_0 = arith.constant 0 : i32
    return %arg0, %c0_i32, %arg1 : i32, i32, i32
  }
}

</mosaic_0001>

<llo_original>
// kernel: _lambda_.2
$region0: #{_lambda_.2}
  #allocation0 [shape = 'u32[]', space=smem, size = 0x4, offset = 0x4, fixed_abs, tag = 'smem constant byte address 0x4 - core index']
  #allocation1 [shape = 'u32[144,128]{1,0:T(1,128)}', space=vmem, size = 0x12000, scoped, tag = 'internal scratch']
  %s0 = inlined_call_operand.vmem [shape: bf16[2,36,256], index: 0, kind: input, shape index: {}]
  %s1 = inlined_call_operand.vmem [shape: bf16[8,36], index: 1, kind: input, shape index: {}]
  %s2 = inlined_call_operand.vmem [shape: bf16[2,8,256], index: 2, kind: output, shape index: {0}]
  %s3 = inlined_call_operand.vmem [shape: f32[2,1,8,2], index: 3, kind: output, shape index: {1}]
  %4 = xla_tuple %s2, %s3
  %s5 = sld [smem:[#allocation0]]
  $region49: #{_lambda_.2} parent=0
    _
  %s7 = ssub.s32 1, %s5
  %s8 = scalar_select 0, %s7, %s5
  loop: start=0, step=1, limit=4
  $region2: #{_lambda_.2} parent=0 // loop_pre_header
    _
  $region3: #{_lambda_.2} parent=0 // loop_header
    %s10 = sphi 0, %s14
    %p11 = scmp.ge.s32.totalorder %s10, 4
    %s17 = sphi 0, %s29
    %s18 = sphi 0, %s25
    %s19 = sphi 0, %s17
    %s20 = sphi 0, %s18
    %s21 = sphi 0, %s19
    %s22 = sphi 0, %s20
    %s34 = sphi 0, %s36
    %s37 = sphi 0, %s34
    %s38 = sphi 0, %s37
    %s54 = sphi 0, %s38
    %s58 = sphi 0, %s58
    %s60 = sphi 0, %s58
    %s61 = sphi 0, %s60
    %s75 = sphi 0, %s61
    %s83 = sphi 0, %s85
    %s86 = sphi 0, %s83
    %s87 = sphi 0, %s86
    %s103 = sphi 0, %s87
    %s111 = sphi 0, %s113
    %s114 = sphi 0, %s111
    %s115 = sphi 0, %s114
    %s131 = sphi 0, %s115
  $region4: #{_lambda_.2} parent=0 // loop_header_branch
    %13 = sbr.rel (%p11) target = $region8
  $region5: #{_lambda_.2} parent=0 // loop_body
    %s15 = ssub.s32 %s10, 1
    %s16 = ssub.s32 %s10, 2
    %s23 = sadd.s32 1, %s18
    %p24 = scmp.ge.s32.totalorder %s23, 1
    %s25 = scalar_select %p24, 0, %s23
    %s26 = sadd.s32 1, %s17
    %s27 = scalar_select %p24, %s26, %s17
    %p28 = scmp.ge.s32.totalorder %s27, 2
    %s29 = scalar_select %p28, 0, %s27
    %s30 = ssub.s32 %s17, %s29
    %s31 = ssub.s32 %s18, %s25
    %s32 = sor.u32 %s30, %s31
    %p33 = scmp.eq.s32.totalorder %s32, 0
    %s35 = sadd.s32 %s34, 1
    %s36 = scalar_select %p33, %s34, %s35
    %p39 = pneg %p33
    %p40 = scmp.eq.s32.totalorder %s10, 1
    %p41 = por %p39, %p40
    %p42 = scmp.ne.s32.totalorder %s34, %s37
    %p43 = scmp.eq.s32.totalorder %s10, 0
    %p44 = por %p42, %p43
    %p45 = scmp.ne.s32.totalorder %s34, %s37
    %p46 = scmp.eq.s32.totalorder %s15, 1
    %p47 = por %p45, %p46
    %p48 = scmp.ne.s32.totalorder %s37, %s38
    %p49 = scmp.eq.s32.totalorder %s15, 0
    %p50 = por %p48, %p49
    %p51 = scmp.ne.s32.totalorder %s37, %s38
    %p52 = scmp.eq.s32.totalorder %s16, 1
    %p53 = por %p51, %p52
    %p55 = scmp.ne.s32.totalorder %s38, %s54
    %p56 = scmp.eq.s32.totalorder %s16, 0
    %p57 = por %p55, %p56
    %s59 = sadd.s32 %s58, 1
    %p62 = scmp.eq.s32.totalorder %s10, 1
    %p63 = scmp.ne.s32.totalorder %s58, %s60
    %p64 = scmp.eq.s32.totalorder %s10, 0
    %p65 = por %p63, %p64
    %p66 = scmp.ne.s32.totalorder %s58, %s60
    %p67 = scmp.eq.s32.totalorder %s15, 1
    %p68 = por %p66, %p67
    %p69 = scmp.ne.s32.totalorder %s60, %s61
    %p70 = scmp.eq.s32.totalorder %s15, 0
    %p71 = por %p69, %p70
    %p72 = scmp.ne.s32.totalorder %s60, %s61
    %p73 = scmp.eq.s32.totalorder %s16, 1
    %p74 = por %p72, %p73
    %p76 = scmp.ne.s32.totalorder %s61, %s75
    %p77 = scmp.eq.s32.totalorder %s16, 0
    %p78 = por %p76, %p77
    %s79 = ssub.s32 %s17, %s29
    %s80 = ssub.s32 %s18, %s25
    %s81 = sor.u32 %s79, %s80
    %p82 = scmp.eq.s32.totalorder %s81, 0
    %s84 = sadd.s32 %s83, 1
    %s85 = scalar_select %p82, %s83, %s84
    %p88 = pneg %p82
    %p89 = scmp.eq.s32.totalorder %s10, 1
    %p90 = por %p88, %p89
    %p91 = scmp.ne.s32.totalorder %s83, %s86
    %p92 = scmp.eq.s32.totalorder %s10, 0
    %p93 = por %p91, %p92
    %p94 = scmp.ne.s32.totalorder %s83, %s86
    %p95 = scmp.eq.s32.totalorder %s15, 1
    %p96 = por %p94, %p95
    %p97 = scmp.ne.s32.totalorder %s86, %s87
    %p98 = scmp.eq.s32.totalorder %s15, 0
    %p99 = por %p97, %p98
    %p100 = scmp.ne.s32.totalorder %s86, %s87
    %p101 = scmp.eq.s32.totalorder %s16, 1
    %p102 = por %p100, %p101
    %p104 = scmp.ne.s32.totalorder %s87, %s103
    %p105 = scmp.eq.s32.totalorder %s16, 0
    %p106 = por %p104, %p105
    %s107 = ssub.s32 %s17, %s29
    %s108 = ssub.s32 %s18, %s25
    %s109 = sor.u32 %s107, %s108
    %p110 = scmp.eq.s32.totalorder %s109, 0
    %s112 = sadd.s32 %s111, 1
    %s113 = scalar_select %p110, %s111, %s112
    %p116 = pneg %p110
    %p117 = scmp.eq.s32.totalorder %s10, 1
    %p118 = por %p116, %p117
    %p119 = scmp.ne.s32.totalorder %s111, %s114
    %p120 = scmp.eq.s32.totalorder %s10, 0
    %p121 = por %p119, %p120
    %p122 = scmp.ne.s32.totalorder %s111, %s114
    %p123 = scmp.eq.s32.totalorder %s15, 1
    %p124 = por %p122, %p123
    %p125 = scmp.ne.s32.totalorder %s114, %s115
    %p126 = scmp.eq.s32.totalorder %s15, 0
    %p127 = por %p125, %p126
    %p128 = scmp.ne.s32.totalorder %s114, %s115
    %p129 = scmp.eq.s32.totalorder %s16, 1
    %p130 = por %p128, %p129
    %p132 = scmp.ne.s32.totalorder %s115, %s131
    %p133 = scmp.eq.s32.totalorder %s16, 0
    %p134 = por %p132, %p133
    %p135 = scmp.le.s32.totalorder 1, %s10
    %p136 = scmp.lt.s32.totalorder %s10, 3
    %p137 = pnand %p135, %p136
    %p138 = pneg %p137
    // Predicated region
    $region9: #{_lambda_.2} parent=5 // pred_check
      _
    $region10: #{_lambda_.2} parent=5 // pred_check_branch
      %140 = sbr.rel (%p137) target = $region12
    $region11: #{_lambda_.2} parent=5 // pred_region
      %s141 = ssub.s32 %s10, 1
      // Predicated region
      $region13: #{_lambda_.2} parent=11 // pred_check
        %p142 = pneg %p71
      $region14: #{_lambda_.2} parent=11 // pred_check_branch
        %144 = sbr.rel (%p142) target = $region16
      $region15: #{_lambda_.2} parent=11 // pred_region
        _
      $region16: #{_lambda_.2} parent=11 // pred_fallthru
        _
    $region12: #{_lambda_.2} parent=5 // pred_fallthru
      _
    %p145 = scmp.lt.s32.totalorder %s10, 2
    // Predicated region
    $region17: #{_lambda_.2} parent=5 // pred_check
      %p146 = pneg %p145
    $region18: #{_lambda_.2} parent=5 // pred_check_branch
      %148 = sbr.rel (%p146) target = $region20
    $region19: #{_lambda_.2} parent=5 // pred_region
      // Predicated region
      $region21: #{_lambda_.2} parent=19 // pred_check
        %p149 = pneg %p44
      $region22: #{_lambda_.2} parent=19 // pred_check_branch
        %151 = sbr.rel (%p149) target = $region24
      $region23: #{_lambda_.2} parent=19 // pred_region
        %s152 = smul.u32 2, %s18
        %p153 = scmp.lt.s32.totalorder %s17, 1
        %s154 = scalar_select %p153, %s17, 1
        %p155 = scmp.lt.s32.totalorder %s152, 1
        %s156 = scalar_select %p155, %s152, 1
        %s157 = smul.addr %s154, 10
        %s158 = sadd.s32 %s156, %s157
        %s159 = smul.addr %s158, 4
        %s160 = scalar_lea.vmem %s0, %s159
        %s161 = smul.u32 2, %s18
      $region24: #{_lambda_.2} parent=19 // pred_fallthru
        _
    $region20: #{_lambda_.2} parent=5 // pred_fallthru
      _
    %p162 = scmp.le.s32.totalorder 1, %s10
    %p163 = scmp.lt.s32.totalorder %s10, 3
    %p164 = pnand %p162, %p163
    %p165 = pneg %p164
    // Predicated region
    $region25: #{_lambda_.2} parent=5 // pred_check
      _
    $region26: #{_lambda_.2} parent=5 // pred_check_branch
      %167 = sbr.rel (%p164) target = $region28
    $region27: #{_lambda_.2} parent=5 // pred_region
      %s168 = ssub.s32 %s10, 1
      %s169 = smul.u32 2, %s20
      %p170 = scmp.lt.s32.totalorder %s19, 1
      %s171 = scalar_select %p170, %s19, 1
      %p172 = scmp.lt.s32.totalorder %s169, 1
      %s173 = scalar_select %p172, %s169, 1
      %s174 = smul.addr %s171, 10
      %s175 = sadd.s32 %s173, %s174
      %s176 = smul.addr %s175, 4
      %s177 = scalar_lea.vmem %s0, %s176
      %p178 = pneg %p50
      %p179 = pneg %p47
      %p180 = pneg %p71
      %p181 = pneg %p68
      %p182 = pneg %p99
      %p183 = pneg %p96
      %s184 = smul.u32 2, %s20
      %p185 = scmp.lt.s32.totalorder %s19, 1
      %s186 = scalar_select %p185, %s19, 1
      %p187 = scmp.lt.s32.totalorder %s184, 1
      %s188 = scalar_select %p187, %s184, 1
      %s189 = smul.addr %s186, 2
      %s190 = sadd.s32 %s188, %s189
      %s191 = smul.addr %s190, 4
      %s192 = scalar_lea.vmem %s2, %s191
      %p193 = pneg %p127
      %p194 = pneg %p124
      %p195 = scmp.lt.s32.totalorder %s19, 1
      %s196 = scalar_select %p195, %s19, 1
      %p197 = scmp.lt.s32.totalorder %s20, 0
      %s198 = scalar_select %p197, %s20, 0
      %s199 = sadd.s32 %s198, %s196
      %s200 = smul.addr %s199, 8
      %s201 = scalar_lea.vmem %s3, %s200
      %s202 = smul.u32 2, %s20
      %p203 = scmp.lt.s32.totalorder %s19, 1
      %s204 = scalar_select %p203, %s19, 1
      %p205 = scmp.lt.s32.totalorder %s202, 1
      %s206 = scalar_select %p205, %s202, 1
      %s207 = smul.addr %s204, 10
      %s208 = sadd.s32 %s206, %s207
      %s209 = smul.addr %s208, 4
      %s210 = scalar_lea.vmem %s0, %s209
      %s211 = smul.u32 2, %s20
      %s212 = smul.u32 2, %s20
      %p213 = scmp.lt.s32.totalorder %s19, 1
      %s214 = scalar_select %p213, %s19, 1
      %p215 = scmp.lt.s32.totalorder %s212, 1
      %s216 = scalar_select %p215, %s212, 1
      %s217 = smul.addr %s214, 2
      %s218 = sadd.s32 %s216, %s217
      %s219 = smul.addr %s218, 4
      %s220 = scalar_lea.vmem %s2, %s219
      %s221 = smul.u32 2, %s20
      %p222 = scmp.lt.s32.totalorder %s19, 1
      %s223 = scalar_select %p222, %s19, 1
      %p224 = scmp.lt.s32.totalorder %s20, 0
      %s225 = scalar_select %p224, %s20, 0
      %s226 = sadd.s32 %s225, %s223
      %s227 = smul.addr %s226, 8
      %s228 = scalar_lea.vmem %s3, %s227
      %v230 = vld [vmem:[%s1] sm:$0xf]
      %v231 = vld [vmem:[%s210] sm:$0xff]
      %v232 = vld [vmem:[%s210 + $0x8] sm:$0xff]
      %v233 = vld [vmem:[%s210 + $0x10] sm:$0xff]
      %v234 = vld [vmem:[%s210 + $0x18] sm:$0xff]
      %v235 = vld [vmem:[%s210 + $0x20] sm:$0x33]
      %v241 = vunpack.c.l.b16 %v231
      %v242 = vunpack.c.h.b16 %v231
      %v243 = vunpack.c.l.b16 %v232
      %v244 = vunpack.c.h.b16 %v232
      %v245 = vunpack.c.l.b16 %v233
      %v246 = vunpack.c.h.b16 %v233
      %v247 = vunpack.c.l.b16 %v234
      %v248 = vunpack.c.h.b16 %v234
      %v249 = vunpack.c.l.b16 %v235
      %v250 = vunpack.c.h.b16 %v235
      %v251 = vpack.c.b16 %v243, %v241
      %v252 = vpack.c.b16 %v244, %v242
      %v253 = vpack.c.b16 %v247, %v245
      %v254 = vpack.c.b16 %v248, %v246
      %v255 = vpack.c.b16 %v249, %v249
      %v256 = vpack.c.b16 %v250, %v250
      %vm261 = vcmask 293888
      %v263 = vsel %vm261, %v230, 0
      %vm265 = vcmask 1041408
      %v267 = vsel %vm265, %v255, 0
      %v270 = vsel %vm265, %v256, 0
      %272 = vmatprep.subr.bf16.mxu0 0
      %273 = vmatpush1.bf16.msra.mxu0 0
      %274 = vmatprep.subr.bf16.mxu0 0
      %275 = vmatpush1.bf16.msra.mxu0 0
      %276 = vmatprep.subr.bf16.mxu0 0
      %277 = vmatpush1.bf16.msra.mxu0 0
      %278 = vmatprep.subr.bf16.mxu0 0
      %279 = vmatpush1.bf16.msra.mxu0 0
      %280 = vmatprep.subr.bf16.mxu0 0
      %281 = vmatpush1.bf16.msra.mxu0 0
      %282 = vmatprep.subr.bf16.mxu0 %v270
      %283 = vmatpush1.bf16.msra.mxu0 %v267
      %284 = vmatprep.subr.bf16.mxu0 %v254
      %285 = vmatpush1.bf16.msra.mxu0 %v253
      %286 = vmatprep.subr.bf16.mxu0 %v252
      %287 = vmatpush1.bf16.msra.mxu0 %v251
      %288 = vmatprep.subr.bf16.mxu0 0
      %289 = vmatpush2.bf16.msra.mxu0 0
      %290 = vmatprep.subr.bf16.mxu0 0
      %291 = vmatpush2.bf16.msra.mxu0 0
      %292 = vmatprep.subr.bf16.mxu0 0
      %293 = vmatpush2.bf16.msra.mxu0 0
      %294 = vmatprep.subr.bf16.mxu0 0
      %295 = vmatpush2.bf16.msra.mxu0 0
      %296 = vmatprep.subr.bf16.mxu0 0
      %297 = vmatpush2.bf16.msra.mxu0 0
      %298 = vmatprep.subr.bf16.mxu0 0
      %299 = vmatpush2.bf16.msra.mxu0 0
      %300 = vmatprep.subr.bf16.mxu0 0
      %301 = vmatpush2.bf16.msra.mxu0 0
      %302 = vmatprep.subr.bf16.mxu0 0
      %303 = vmatpush2.bf16.msra.mxu0 0
      %304 = vmatprep.mubr.bf16.mxu0 0
      %305 = vmatmul.mubr.bf16.gmra.mxu0 %v263
      %v306 = vpop.f32.mrf.mxu0
      %v307 = vadd.f32 0.0, %v306
      %v308 = vpop.f32.mrf.mxu0
      %v309 = vadd.f32 0.0, %v308
      %v310 = vpop.f32.mrf.mxu0
      %v311 = vpop.f32.mrf.mxu0
      %312 = vdwg.mxu0
      %v313 = vpack.c.bf16 %v307, %v307
      %v314 = vpack.c.bf16 %v309, %v309
      %v317 = vunpack.c.l.b16 %v313
      %v318 = vunpack.c.l.b16 %v314
      %v319 = vpack.c.b16 %v318, %v317
      %321 = vst [vmem:[%s220] sm:$0xff] %v319
      %v322 = vadd.f32 %v307, %v309
      %323 = vadd.xlane.f32.xlu0 %v322
      %v324 = vpop.xlane.xlu0 %323
      %v325 = vmul.f32 %v307, %v307
      %v326 = vmul.f32 %v309, %v309
      %v327 = vadd.f32 %v325, %v326
      %328 = vadd.xlane.f32.xlu0 %v327
      %v329 = vpop.xlane.xlu0 %328
      %vm330 = vcmask 7168
      %v331 = vsel %vm330, %v324, %v329
      %vm332 = vcmask 15360
      %333 = vst.msk [vmem:[%s228] sm:$0xff] %vm332, %v331
      %s334 = smul.u32 2, %s20
      %p335 = scmp.lt.s32.totalorder %s19, 1
      %s336 = scalar_select %p335, %s19, 1
      %p337 = scmp.lt.s32.totalorder %s334, 1
      %s338 = scalar_select %p337, %s334, 1
      %s339 = smul.addr %s336, 2
      %s340 = sadd.s32 %s338, %s339
      %s341 = smul.addr %s340, 4
      %s342 = scalar_lea.vmem %s2, %s341
      %p343 = scmp.lt.s32.totalorder %s19, 1
      %s344 = scalar_select %p343, %s19, 1
      %p345 = scmp.lt.s32.totalorder %s20, 0
      %s346 = scalar_select %p345, %s20, 0
      %s347 = sadd.s32 %s346, %s344
      %s348 = smul.addr %s347, 8
      %s349 = scalar_lea.vmem %s3, %s348
      // Predicated region
      $region29: #{_lambda_.2} parent=27 // pred_check
        %p350 = pneg %p96
      $region30: #{_lambda_.2} parent=27 // pred_check_branch
        %352 = sbr.rel (%p350) target = $region32
      $region31: #{_lambda_.2} parent=27 // pred_region
        %s353 = smul.u32 2, %s20
      $region32: #{_lambda_.2} parent=27 // pred_fallthru
        _
      // Predicated region
      $region33: #{_lambda_.2} parent=27 // pred_check
        %p354 = pneg %p124
      $region34: #{_lambda_.2} parent=27 // pred_check_branch
        %356 = sbr.rel (%p354) target = $region36
      $region35: #{_lambda_.2} parent=27 // pred_region
        _
      $region36: #{_lambda_.2} parent=27 // pred_fallthru
        _
    $region28: #{_lambda_.2} parent=5 // pred_fallthru
      _
    %p357 = scmp.le.s32.totalorder 2, %s10
    // Predicated region
    $region37: #{_lambda_.2} parent=5 // pred_check
      %p358 = pneg %p357
    $region38: #{_lambda_.2} parent=5 // pred_check_branch
      %360 = sbr.rel (%p358) target = $region40
    $region39: #{_lambda_.2} parent=5 // pred_region
      %s361 = ssub.s32 %s10, 2
      // Predicated region
      $region41: #{_lambda_.2} parent=39 // pred_check
        %p362 = pneg %p102
      $region42: #{_lambda_.2} parent=39 // pred_check_branch
        %364 = sbr.rel (%p362) target = $region44
      $region43: #{_lambda_.2} parent=39 // pred_region
        %s365 = smul.u32 2, %s22
        %p366 = scmp.lt.s32.totalorder %s21, 1
        %s367 = scalar_select %p366, %s21, 1
        %p368 = scmp.lt.s32.totalorder %s365, 1
        %s369 = scalar_select %p368, %s365, 1
        %s370 = smul.addr %s367, 2
        %s371 = sadd.s32 %s369, %s370
        %s372 = smul.addr %s371, 4
        %s373 = scalar_lea.vmem %s2, %s372
      $region44: #{_lambda_.2} parent=39 // pred_fallthru
        _
      // Predicated region
      $region45: #{_lambda_.2} parent=39 // pred_check
        %p374 = pneg %p130
      $region46: #{_lambda_.2} parent=39 // pred_check_branch
        %376 = sbr.rel (%p374) target = $region48
      $region47: #{_lambda_.2} parent=39 // pred_region
        %p377 = scmp.lt.s32.totalorder %s21, 1
        %s378 = scalar_select %p377, %s21, 1
        %p379 = scmp.lt.s32.totalorder %s22, 0
        %s380 = scalar_select %p379, %s22, 0
        %s381 = sadd.s32 %s380, %s378
        %s382 = smul.addr %s381, 8
        %s383 = scalar_lea.vmem %s3, %s382
      $region48: #{_lambda_.2} parent=39 // pred_fallthru
        _
    $region40: #{_lambda_.2} parent=5 // pred_fallthru
      _
  $region6: #{_lambda_.2} parent=0 // loop_footer
    %s14 = sadd.s32 1, %s10
  $region7: #{_lambda_.2} parent=0 // loop_footer_branch
    %9 = sbr.rel target = $region3
  $region8: #{_lambda_.2} parent=0 // loop_exit
    _

// kernel: _lambda_.3
$region0: #{_lambda_.3}
  #allocation0 [shape = 'u32[]', space=smem, size = 0x4, offset = 0x4, fixed_abs, tag = 'smem constant byte address 0x4 - core index']
  #allocation1 [shape = 'u32[144,128]{1,0:T(1,128)}', space=vmem, size = 0x12000, scoped, tag = 'internal scratch']
  %s0 = inlined_call_operand.vmem [shape: bf16[2,8,256], index: 0, kind: input, shape index: {}]
  %s1 = inlined_call_operand.vmem [shape: f32[8,1], index: 1, kind: input, shape index: {}]
  %s2 = inlined_call_operand.vmem [shape: f32[8,1], index: 2, kind: input, shape index: {}]
  %s3 = inlined_call_operand.vmem [shape: f32[2,8,256], index: 3, kind: output, shape index: {}]
  %s4 = sld [smem:[#allocation0]]
  $region45: #{_lambda_.3} parent=0
    _
  %s6 = ssub.s32 1, %s4
  %s7 = scalar_select 0, %s6, %s4
  loop: start=0, step=1, limit=4
  $region2: #{_lambda_.3} parent=0 // loop_pre_header
    _
  $region3: #{_lambda_.3} parent=0 // loop_header
    %s9 = sphi 0, %s13
    %p10 = scmp.ge.s32.totalorder %s9, 4
    %s16 = sphi 0, %s28
    %s17 = sphi 0, %s24
    %s18 = sphi 0, %s16
    %s19 = sphi 0, %s17
    %s20 = sphi 0, %s18
    %s21 = sphi 0, %s19
    %s33 = sphi 0, %s35
    %s36 = sphi 0, %s33
    %s37 = sphi 0, %s36
    %s53 = sphi 0, %s37
    %s57 = sphi 0, %s57
    %s59 = sphi 0, %s57
    %s60 = sphi 0, %s59
    %s74 = sphi 0, %s60
    %s78 = sphi 0, %s78
    %s80 = sphi 0, %s78
    %s81 = sphi 0, %s80
    %s95 = sphi 0, %s81
    %s103 = sphi 0, %s105
    %s106 = sphi 0, %s103
    %s107 = sphi 0, %s106
    %s123 = sphi 0, %s107
  $region4: #{_lambda_.3} parent=0 // loop_header_branch
    %12 = sbr.rel (%p10) target = $region8
  $region5: #{_lambda_.3} parent=0 // loop_body
    %s14 = ssub.s32 %s9, 1
    %s15 = ssub.s32 %s9, 2
    %s22 = sadd.s32 1, %s17
    %p23 = scmp.ge.s32.totalorder %s22, 1
    %s24 = scalar_select %p23, 0, %s22
    %s25 = sadd.s32 1, %s16
    %s26 = scalar_select %p23, %s25, %s16
    %p27 = scmp.ge.s32.totalorder %s26, 2
    %s28 = scalar_select %p27, 0, %s26
    %s29 = ssub.s32 %s16, %s28
    %s30 = ssub.s32 %s17, %s24
    %s31 = sor.u32 %s29, %s30
    %p32 = scmp.eq.s32.totalorder %s31, 0
    %s34 = sadd.s32 %s33, 1
    %s35 = scalar_select %p32, %s33, %s34
    %p38 = pneg %p32
    %p39 = scmp.eq.s32.totalorder %s9, 1
    %p40 = por %p38, %p39
    %p41 = scmp.ne.s32.totalorder %s33, %s36
    %p42 = scmp.eq.s32.totalorder %s9, 0
    %p43 = por %p41, %p42
    %p44 = scmp.ne.s32.totalorder %s33, %s36
    %p45 = scmp.eq.s32.totalorder %s14, 1
    %p46 = por %p44, %p45
    %p47 = scmp.ne.s32.totalorder %s36, %s37
    %p48 = scmp.eq.s32.totalorder %s14, 0
    %p49 = por %p47, %p48
    %p50 = scmp.ne.s32.totalorder %s36, %s37
    %p51 = scmp.eq.s32.totalorder %s15, 1
    %p52 = por %p50, %p51
    %p54 = scmp.ne.s32.totalorder %s37, %s53
    %p55 = scmp.eq.s32.totalorder %s15, 0
    %p56 = por %p54, %p55
    %s58 = sadd.s32 %s57, 1
    %p61 = scmp.eq.s32.totalorder %s9, 1
    %p62 = scmp.ne.s32.totalorder %s57, %s59
    %p63 = scmp.eq.s32.totalorder %s9, 0
    %p64 = por %p62, %p63
    %p65 = scmp.ne.s32.totalorder %s57, %s59
    %p66 = scmp.eq.s32.totalorder %s14, 1
    %p67 = por %p65, %p66
    %p68 = scmp.ne.s32.totalorder %s59, %s60
    %p69 = scmp.eq.s32.totalorder %s14, 0
    %p70 = por %p68, %p69
    %p71 = scmp.ne.s32.totalorder %s59, %s60
    %p72 = scmp.eq.s32.totalorder %s15, 1
    %p73 = por %p71, %p72
    %p75 = scmp.ne.s32.totalorder %s60, %s74
    %p76 = scmp.eq.s32.totalorder %s15, 0
    %p77 = por %p75, %p76
    %s79 = sadd.s32 %s78, 1
    %p82 = scmp.eq.s32.totalorder %s9, 1
    %p83 = scmp.ne.s32.totalorder %s78, %s80
    %p84 = scmp.eq.s32.totalorder %s9, 0
    %p85 = por %p83, %p84
    %p86 = scmp.ne.s32.totalorder %s78, %s80
    %p87 = scmp.eq.s32.totalorder %s14, 1
    %p88 = por %p86, %p87
    %p89 = scmp.ne.s32.totalorder %s80, %s81
    %p90 = scmp.eq.s32.totalorder %s14, 0
    %p91 = por %p89, %p90
    %p92 = scmp.ne.s32.totalorder %s80, %s81
    %p93 = scmp.eq.s32.totalorder %s15, 1
    %p94 = por %p92, %p93
    %p96 = scmp.ne.s32.totalorder %s81, %s95
    %p97 = scmp.eq.s32.totalorder %s15, 0
    %p98 = por %p96, %p97
    %s99 = ssub.s32 %s16, %s28
    %s100 = ssub.s32 %s17, %s24
    %s101 = sor.u32 %s99, %s100
    %p102 = scmp.eq.s32.totalorder %s101, 0
    %s104 = sadd.s32 %s103, 1
    %s105 = scalar_select %p102, %s103, %s104
    %p108 = pneg %p102
    %p109 = scmp.eq.s32.totalorder %s9, 1
    %p110 = por %p108, %p109
    %p111 = scmp.ne.s32.totalorder %s103, %s106
    %p112 = scmp.eq.s32.totalorder %s9, 0
    %p113 = por %p111, %p112
    %p114 = scmp.ne.s32.totalorder %s103, %s106
    %p115 = scmp.eq.s32.totalorder %s14, 1
    %p116 = por %p114, %p115
    %p117 = scmp.ne.s32.totalorder %s106, %s107
    %p118 = scmp.eq.s32.totalorder %s14, 0
    %p119 = por %p117, %p118
    %p120 = scmp.ne.s32.totalorder %s106, %s107
    %p121 = scmp.eq.s32.totalorder %s15, 1
    %p122 = por %p120, %p121
    %p124 = scmp.ne.s32.totalorder %s107, %s123
    %p125 = scmp.eq.s32.totalorder %s15, 0
    %p126 = por %p124, %p125
    %p127 = scmp.le.s32.totalorder 1, %s9
    %p128 = scmp.lt.s32.totalorder %s9, 3
    %p129 = pnand %p127, %p128
    %p130 = pneg %p129
    // Predicated region
    $region9: #{_lambda_.3} parent=5 // pred_check
      _
    $region10: #{_lambda_.3} parent=5 // pred_check_branch
      %132 = sbr.rel (%p129) target = $region12
    $region11: #{_lambda_.3} parent=5 // pred_region
      %s133 = ssub.s32 %s9, 1
      // Predicated region
      $region13: #{_lambda_.3} parent=11 // pred_check
        %p134 = pneg %p70
      $region14: #{_lambda_.3} parent=11 // pred_check_branch
        %136 = sbr.rel (%p134) target = $region16
      $region15: #{_lambda_.3} parent=11 // pred_region
        _
      $region16: #{_lambda_.3} parent=11 // pred_fallthru
        _
      // Predicated region
      $region17: #{_lambda_.3} parent=11 // pred_check
        %p137 = pneg %p91
      $region18: #{_lambda_.3} parent=11 // pred_check_branch
        %139 = sbr.rel (%p137) target = $region20
      $region19: #{_lambda_.3} parent=11 // pred_region
        _
      $region20: #{_lambda_.3} parent=11 // pred_fallthru
        _
    $region12: #{_lambda_.3} parent=5 // pred_fallthru
      _
    %p140 = scmp.lt.s32.totalorder %s9, 2
    // Predicated region
    $region21: #{_lambda_.3} parent=5 // pred_check
      %p141 = pneg %p140
    $region22: #{_lambda_.3} parent=5 // pred_check_branch
      %143 = sbr.rel (%p141) target = $region24
    $region23: #{_lambda_.3} parent=5 // pred_region
      // Predicated region
      $region25: #{_lambda_.3} parent=23 // pred_check
        %p144 = pneg %p43
      $region26: #{_lambda_.3} parent=23 // pred_check_branch
        %146 = sbr.rel (%p144) target = $region28
      $region27: #{_lambda_.3} parent=23 // pred_region
        %s147 = smul.u32 2, %s17
        %p148 = scmp.lt.s32.totalorder %s16, 1
        %s149 = scalar_select %p148, %s16, 1
        %p150 = scmp.lt.s32.totalorder %s147, 1
        %s151 = scalar_select %p150, %s147, 1
        %s152 = smul.addr %s149, 2
        %s153 = sadd.s32 %s151, %s152
        %s154 = smul.addr %s153, 4
        %s155 = scalar_lea.vmem %s0, %s154
        %s156 = smul.u32 2, %s17
      $region28: #{_lambda_.3} parent=23 // pred_fallthru
        _
    $region24: #{_lambda_.3} parent=5 // pred_fallthru
      _
    %p157 = scmp.le.s32.totalorder 1, %s9
    %p158 = scmp.lt.s32.totalorder %s9, 3
    %p159 = pnand %p157, %p158
    %p160 = pneg %p159
    // Predicated region
    $region29: #{_lambda_.3} parent=5 // pred_check
      _
    $region30: #{_lambda_.3} parent=5 // pred_check_branch
      %162 = sbr.rel (%p159) target = $region32
    $region31: #{_lambda_.3} parent=5 // pred_region
      %s163 = ssub.s32 %s9, 1
      %s164 = smul.u32 2, %s19
      %p165 = scmp.lt.s32.totalorder %s18, 1
      %s166 = scalar_select %p165, %s18, 1
      %p167 = scmp.lt.s32.totalorder %s164, 1
      %s168 = scalar_select %p167, %s164, 1
      %s169 = smul.addr %s166, 2
      %s170 = sadd.s32 %s168, %s169
      %s171 = smul.addr %s170, 4
      %s172 = scalar_lea.vmem %s0, %s171
      %p173 = pneg %p49
      %p174 = pneg %p46
      %p175 = pneg %p70
      %p176 = pneg %p67
      %p177 = pneg %p91
      %p178 = pneg %p88
      %p179 = pneg %p119
      %p180 = pneg %p116
      %s181 = smul.u32 2, %s19
      %p182 = scmp.lt.s32.totalorder %s18, 1
      %s183 = scalar_select %p182, %s18, 1
      %p184 = scmp.lt.s32.totalorder %s181, 1
      %s185 = scalar_select %p184, %s181, 1
      %s186 = smul.addr %s183, 2
      %s187 = sadd.s32 %s185, %s186
      %s188 = smul.addr %s187, 8
      %s189 = scalar_lea.vmem %s3, %s188
      %s190 = smul.u32 2, %s19
      %p191 = scmp.lt.s32.totalorder %s18, 1
      %s192 = scalar_select %p191, %s18, 1
      %p193 = scmp.lt.s32.totalorder %s190, 1
      %s194 = scalar_select %p193, %s190, 1
      %s195 = smul.addr %s192, 2
      %s196 = sadd.s32 %s194, %s195
      %s197 = smul.addr %s196, 4
      %s198 = scalar_lea.vmem %s0, %s197
      %s199 = smul.u32 2, %s19
      %s200 = smul.u32 2, %s19
      %p201 = scmp.lt.s32.totalorder %s18, 1
      %s202 = scalar_select %p201, %s18, 1
      %p203 = scmp.lt.s32.totalorder %s200, 1
      %s204 = scalar_select %p203, %s200, 1
      %s205 = smul.addr %s202, 2
      %s206 = sadd.s32 %s204, %s205
      %s207 = smul.addr %s206, 8
      %s208 = scalar_lea.vmem %s3, %s207
      %s209 = smul.u32 2, %s19
      %v210 = vld [vmem:[%s198] sm:$0xff]
      %v211 = vunpack.c.l.bf16 %v210
      %v212 = vunpack.c.h.bf16 %v210
      %v213 = vld [vmem:[%s1] sm:$0xff]
      %215 = vset.pattern.permute.xlu0 0
      %216 = vperm.xlu0 %215, %v213
      %v217 = vpop.permute.xlu0 %216
      %v219 = vmul.f32 %v211, %v217
      %v220 = vmul.f32 %v212, %v217
      %v221 = vld [vmem:[%s2] sm:$0xff]
      %223 = vset.pattern.permute.xlu0 0
      %224 = vperm.xlu0 %223, %v221
      %v225 = vpop.permute.xlu0 %224
      %v227 = vadd.f32 %v219, %v225
      %v228 = vadd.f32 %v220, %v225
      %v229 = vmax.f32 %v227, 0.0
      %v230 = vmax.f32 %v228, 0.0
      %231 = vst [vmem:[%s208] sm:$0xff] %v229
      %232 = vst [vmem:[%s208 + $0x8] sm:$0xff] %v230
      %s233 = smul.u32 2, %s19
      %p234 = scmp.lt.s32.totalorder %s18, 1
      %s235 = scalar_select %p234, %s18, 1
      %p236 = scmp.lt.s32.totalorder %s233, 1
      %s237 = scalar_select %p236, %s233, 1
      %s238 = smul.addr %s235, 2
      %s239 = sadd.s32 %s237, %s238
      %s240 = smul.addr %s239, 8
      %s241 = scalar_lea.vmem %s3, %s240
      // Predicated region
      $region33: #{_lambda_.3} parent=31 // pred_check
        %p242 = pneg %p116
      $region34: #{_lambda_.3} parent=31 // pred_check_branch
        %244 = sbr.rel (%p242) target = $region36
      $region35: #{_lambda_.3} parent=31 // pred_region
        %s245 = smul.u32 2, %s19
      $region36: #{_lambda_.3} parent=31 // pred_fallthru
        _
    $region32: #{_lambda_.3} parent=5 // pred_fallthru
      _
    %p246 = scmp.le.s32.totalorder 2, %s9
    // Predicated region
    $region37: #{_lambda_.3} parent=5 // pred_check
      %p247 = pneg %p246
    $region38: #{_lambda_.3} parent=5 // pred_check_branch
      %249 = sbr.rel (%p247) target = $region40
    $region39: #{_lambda_.3} parent=5 // pred_region
      %s250 = ssub.s32 %s9, 2
      // Predicated region
      $region41: #{_lambda_.3} parent=39 // pred_check
        %p251 = pneg %p122
      $region42: #{_lambda_.3} parent=39 // pred_check_branch
        %253 = sbr.rel (%p251) target = $region44
      $region43: #{_lambda_.3} parent=39 // pred_region
        %s254 = smul.u32 2, %s21
        %p255 = scmp.lt.s32.totalorder %s20, 1
        %s256 = scalar_select %p255, %s20, 1
        %p257 = scmp.lt.s32.totalorder %s254, 1
        %s258 = scalar_select %p257, %s254, 1
        %s259 = smul.addr %s256, 2
        %s260 = sadd.s32 %s258, %s259
        %s261 = smul.addr %s260, 8
        %s262 = scalar_lea.vmem %s3, %s261
      $region44: #{_lambda_.3} parent=39 // pred_fallthru
        _
    $region40: #{_lambda_.3} parent=5 // pred_fallthru
      _
  $region6: #{_lambda_.3} parent=0 // loop_footer
    %s13 = sadd.s32 1, %s9
  $region7: #{_lambda_.3} parent=0 // loop_footer_branch
    %8 = sbr.rel target = $region3
  $region8: #{_lambda_.3} parent=0 // loop_exit
    _

</llo_original>
